<compile_context>
chip_gen: v7x
topology: tpu7x:2x2x1
jax: 0.10.0
libtpu: 0.0.40
codegen_flags: <defaults>
</compile_context>

<pallas_src>
import functools

import jax
import jax.numpy as jnp
from jax.experimental import pallas as pl
from jax.experimental.pallas import tpu as pltpu


def _round_up(x, m):
    return ((x + m - 1) // m) * m


def _pairnet_kernel(x_ref, w1_ref, b1_ref, w2_ref, b2_ref, w3_ref, b3_ref,
                    o_ref):
    # Fully fused: three matmuls + bias + ReLU; hidden activations never leave
    # VMEM/vregs. MXU operands in compute dtype (bf16 by default), f32 accum.
    x = x_ref[...].astype(w1_ref.dtype)          # cast in-kernel (no HBM copy)
    h = jnp.dot(x, w1_ref[...], preferred_element_type=jnp.float32)
    h = jnp.maximum(h + b1_ref[...], 0.0)

    h = jnp.dot(h.astype(w2_ref.dtype), w2_ref[...],
                preferred_element_type=jnp.float32)
    h = jnp.maximum(h + b2_ref[...], 0.0)

    out = jnp.dot(h.astype(w3_ref.dtype), w3_ref[...],
                  preferred_element_type=jnp.float32)
    out = out + b3_ref[...]
    o_ref[...] = out.astype(o_ref.dtype)


def prepare_pairnet_params(params, compute_dtype=jnp.bfloat16):
    """One-time pad + cast, hoisted out of the per-call path.

    Weights stored [in, out] in `compute_dtype`, biases [1, out] in f32.
    The last layer's output columns are zero-padded to a multiple of 128 so
    the kernel's output stores are lane-dense (unmasked vst).
    """
    w1, b1 = params["w1"], params["b1"]
    w2, b2 = params["w2"], params["b2"]
    w3, b3 = params["w3"], params["b3"]
    dim_out = w3.shape[1]
    dout_p = _round_up(dim_out, 128)
    if dout_p != dim_out:
        w3 = jnp.pad(w3, ((0, 0), (0, dout_p - dim_out)))
        b3 = jnp.pad(b3, ((0, 0), (0, dout_p - dim_out)))
    return {
        "w1": w1.astype(compute_dtype), "b1": b1.astype(jnp.float32),
        "w2": w2.astype(compute_dtype), "b2": b2.astype(jnp.float32),
        "w3": w3.astype(compute_dtype), "b3": b3.astype(jnp.float32),
    }


@functools.partial(jax.jit, static_argnames=("dim_out", "block_m", "out_dtype"))
def pairnet_forward(x, prepared, *, dim_out, block_m=512, out_dtype=None):
    """x: [B, dim_in]. prepared: output of prepare_pairnet_params."""
    w1, b1 = prepared["w1"], prepared["b1"]
    w2, b2 = prepared["w2"], prepared["b2"]
    w3, b3 = prepared["w3"], prepared["b3"]

    B, dim_in = x.shape
    h1 = w1.shape[1]            # 512
    h2 = w2.shape[1]            # 256
    dout_p = w3.shape[1]        # dim_out rounded up to 128
    out_dtype = x.dtype if out_dtype is None else out_dtype

    # Batch tile: big (default 512) to amortize per-grid-step overhead, but
    # capped so there are always >= 2 grid steps (v7x has 2 TensorCores and
    # the "parallel" axis is sharded across them) and tiny batches are not
    # over-padded. Sublane-aligned (multiple of 8).
    bm = min(block_m, _round_up(pl.cdiv(B, 2), 8))
    bm = max(bm, 8)
    grid = (pl.cdiv(B, bm),)    # ragged last block handled by Pallas

    in_specs = [
        pl.BlockSpec((bm, dim_in), lambda i: (i, 0)),   # x tile (full-width K)
        pl.BlockSpec((dim_in, h1), lambda i: (0, 0)),   # w1 (resident)
        pl.BlockSpec((1, h1), lambda i: (0, 0)),        # b1
        pl.BlockSpec((h1, h2), lambda i: (0, 0)),       # w2
        pl.BlockSpec((1, h2), lambda i: (0, 0)),        # b2
        pl.BlockSpec((h2, dout_p), lambda i: (0, 0)),   # w3 (col-padded)
        pl.BlockSpec((1, dout_p), lambda i: (0, 0)),    # b3
    ]
    out_specs = pl.BlockSpec((bm, dout_p), lambda i: (i, 0))

    w_bytes = sum(int(a.size) * a.dtype.itemsize for a in (w1, w2, w3))
    b_bytes = sum(int(a.size) * 4 for a in (b1, b2, b3))
    cost = pl.CostEstimate(
        flops=2 * B * (dim_in * h1 + h1 * h2 + h2 * dout_p),
        transcendentals=0,
        bytes_accessed=(int(x.size) * x.dtype.itemsize + w_bytes + b_bytes
                        + B * dout_p * jnp.dtype(out_dtype).itemsize),
    )

    out_p = pl.pallas_call(
        _pairnet_kernel,
        out_shape=jax.ShapeDtypeStruct((B, dout_p), out_dtype),
        grid_spec=pltpu.PrefetchScalarGridSpec(
            num_scalar_prefetch=0,
            grid=grid,
            in_specs=in_specs,
            out_specs=out_specs,
        ),
        compiler_params=pltpu.CompilerParams(
            dimension_semantics=("parallel",),
        ),
        cost_estimate=cost,
    )(x, w1, b1, w2, b2, w3, b3)

    # Strip output-column padding only if there is any.
    if dout_p != dim_out:
        out_p = out_p[:, :dim_out]
    return out_p


def init_pairnet_params(key, dim_in, dim_out):
    """Deterministic synthetic init (shapes match nn.Linear, stored as [in, out])."""
    k1, k2, k3, k4, k5, k6 = jax.random.split(key, 6)

    def lin(kw, kb, fan_in, fan_out):
        bound = 1.0 / jnp.sqrt(fan_in)
        w = jax.random.uniform(kw, (fan_in, fan_out), jnp.float32,
                               minval=-bound, maxval=bound)
        b = jax.random.uniform(kb, (1, fan_out), jnp.float32,
                               minval=-bound, maxval=bound)
        return w, b

    w1, b1 = lin(k1, k2, dim_in, 512)
    w2, b2 = lin(k3, k4, 512, 256)
    w3, b3 = lin(k5, k6, 256, dim_out)
    return {"w1": w1, "b1": b1, "w2": w2, "b2": b2, "w3": w3, "b3": b3}


def pairnet_reference(x, p):
    h = jnp.maximum(x @ p["w1"] + p["b1"], 0.0)
    h = jnp.maximum(h @ p["w2"] + p["b2"], 0.0)
    return h @ p["w3"] + p["b3"]


if __name__ == "__main__":
    key = jax.random.PRNGKey(0)
    kx, kp = jax.random.split(key)

    dim_in, dim_out = 32, 16
    batch = 64

    x = jax.random.normal(kx, (batch, dim_in), jnp.float32)
    params = init_pairnet_params(kp, dim_in, dim_out)
    ref = pairnet_reference(x, params)

    # Exact-semantics path (f32 matmul operands) — tight tolerance.
    prep_f32 = prepare_pairnet_params(params, compute_dtype=jnp.float32)
    out_f32 = jax.block_until_ready(pairnet_forward(x, prep_f32, dim_out=dim_out))
    assert out_f32.shape == (batch, dim_out)
    assert jnp.allclose(out_f32, ref, atol=1e-3, rtol=1e-3), "f32 mismatch"

    # Fast path (bf16 MXU operands, f32 accumulation) — looser tolerance.
    prep_bf16 = prepare_pairnet_params(params, compute_dtype=jnp.bfloat16)
    out_bf16 = jax.block_until_ready(pairnet_forward(x, prep_bf16, dim_out=dim_out))
    assert out_bf16.shape == (batch, dim_out)
    assert jnp.allclose(out_bf16, ref, atol=5e-2, rtol=5e-2), "bf16 mismatch"

    # Ragged batch (B not a multiple of the tile) exercises the
    # non-divisible-grid path (no wrapper-side batch padding anymore).
    x_odd = jax.random.normal(kx, (batch + 6, dim_in), jnp.float32)
    out_odd = jax.block_until_ready(pairnet_forward(x_odd, prep_f32, dim_out=dim_out))
    ref_odd = pairnet_reference(x_odd, params)
    assert out_odd.shape == (batch + 6, dim_out)
    assert jnp.allclose(out_odd, ref_odd, atol=1e-3, rtol=1e-3), "ragged-batch mismatch"

    print("KERNEL_OK")
</pallas_src>

<mosaic_0001>
module attributes {stable_mosaic.version = 11 : i64} {
  func.func @_pairnet_kernel(%arg0: i32, %arg1: memref<32x32xf32, #tpu.memory_space<vmem>>, %arg2: memref<32x512xf32, #tpu.memory_space<vmem>>, %arg3: memref<1x512xf32, #tpu.memory_space<vmem>>, %arg4: memref<512x256xf32, #tpu.memory_space<vmem>>, %arg5: memref<1x256xf32, #tpu.memory_space<vmem>>, %arg6: memref<256x128xf32, #tpu.memory_space<vmem>>, %arg7: memref<1x128xf32, #tpu.memory_space<vmem>>, %arg8: memref<32x128xf32, #tpu.memory_space<vmem>>) attributes {dimension_semantics = [#tpu.dimension_semantics<parallel>], iteration_bounds = array<i64: 2>, scalar_prefetch = 0 : i64, scratch_operands = 0 : i64, tpu.core_type = #tpu.core_type<tc>, window_params = [{transform_indices = @transform_0, window_bounds = array<i64: 32, 32>}, {pipeline_mode = #tpu.pipeline_mode<synchronous>, transform_indices = @transform_1, window_bounds = array<i64: 32, 512>}, {pipeline_mode = #tpu.pipeline_mode<synchronous>, transform_indices = @transform_2, window_bounds = array<i64: 1, 512>}, {pipeline_mode = #tpu.pipeline_mode<synchronous>, transform_indices = @transform_3, window_bounds = array<i64: 512, 256>}, {pipeline_mode = #tpu.pipeline_mode<synchronous>, transform_indices = @transform_4, window_bounds = array<i64: 1, 256>}, {pipeline_mode = #tpu.pipeline_mode<synchronous>, transform_indices = @transform_5, window_bounds = array<i64: 256, 128>}, {pipeline_mode = #tpu.pipeline_mode<synchronous>, transform_indices = @transform_6, window_bounds = array<i64: 1, 128>}, {transform_indices = @transform_7, window_bounds = array<i64: 32, 128>}]} {
    %c0 = arith.constant 0 : index
    %c0_0 = arith.constant 0 : index
    %0 = vector.load %arg1[%c0, %c0_0] : memref<32x32xf32, #tpu.memory_space<vmem>>, vector<32x32xf32>
    %c0_1 = arith.constant 0 : index
    %c0_2 = arith.constant 0 : index
    %1 = vector.load %arg2[%c0_1, %c0_2] : memref<32x512xf32, #tpu.memory_space<vmem>>, vector<32x512xf32>
    %cst = arith.constant dense<0.000000e+00> : vector<32x512xf32>
    %2 = tpu.matmul %0, %1, %cst {dimension_numbers = #tpu.dot_dimension_numbers<[1], [0], [0], [1], [0, 0, 1, 1], [], []>} : vector<32x32xf32>, vector<32x512xf32>, vector<32x512xf32> -> vector<32x512xf32>
    %c0_3 = arith.constant 0 : index
    %c0_4 = arith.constant 0 : index
    %3 = vector.load %arg3[%c0_3, %c0_4] : memref<1x512xf32, #tpu.memory_space<vmem>>, vector<1x512xf32>
    %4 = vector.broadcast %3 : vector<1x512xf32> to vector<32x512xf32>
    %5 = arith.addf %2, %4 : vector<32x512xf32>
    %cst_5 = arith.constant 0.000000e+00 : f32
    %6 = vector.broadcast %cst_5 : f32 to vector<32x512xf32>
    %7 = arith.maximumf %5, %6 : vector<32x512xf32>
    %c0_6 = arith.constant 0 : index
    %c0_7 = arith.constant 0 : index
    %8 = vector.load %arg4[%c0_6, %c0_7] : memref<512x256xf32, #tpu.memory_space<vmem>>, vector<512x256xf32>
    %cst_8 = arith.constant dense<0.000000e+00> : vector<32x256xf32>
    %9 = tpu.matmul %7, %8, %cst_8 {dimension_numbers = #tpu.dot_dimension_numbers<[1], [0], [0], [1], [0, 0, 1, 1], [], []>} : vector<32x512xf32>, vector<512x256xf32>, vector<32x256xf32> -> vector<32x256xf32>
    %c0_9 = arith.constant 0 : index
    %c0_10 = arith.constant 0 : index
    %10 = vector.load %arg5[%c0_9, %c0_10] : memref<1x256xf32, #tpu.memory_space<vmem>>, vector<1x256xf32>
    %11 = vector.broadcast %10 : vector<1x256xf32> to vector<32x256xf32>
    %12 = arith.addf %9, %11 : vector<32x256xf32>
    %cst_11 = arith.constant 0.000000e+00 : f32
    %13 = vector.broadcast %cst_11 : f32 to vector<32x256xf32>
    %14 = arith.maximumf %12, %13 : vector<32x256xf32>
    %c0_12 = arith.constant 0 : index
    %c0_13 = arith.constant 0 : index
    %15 = vector.load %arg6[%c0_12, %c0_13] : memref<256x128xf32, #tpu.memory_space<vmem>>, vector<256x128xf32>
    %cst_14 = arith.constant dense<0.000000e+00> : vector<32x128xf32>
    %16 = tpu.matmul %14, %15, %cst_14 {dimension_numbers = #tpu.dot_dimension_numbers<[1], [0], [0], [1], [0, 0, 1, 1], [], []>} : vector<32x256xf32>, vector<256x128xf32>, vector<32x128xf32> -> vector<32x128xf32>
    %c0_15 = arith.constant 0 : index
    %c0_16 = arith.constant 0 : index
    %17 = vector.load %arg7[%c0_15, %c0_16] : memref<1x128xf32, #tpu.memory_space<vmem>>, vector<1x128xf32>
    %18 = vector.broadcast %17 : vector<1x128xf32> to vector<32x128xf32>
    %19 = arith.addf %16, %18 : vector<32x128xf32>
    %c0_17 = arith.constant 0 : index
    %c0_18 = arith.constant 0 : index
    %20 = vector.load %arg8[%c0_17, %c0_18] : memref<32x128xf32, #tpu.memory_space<vmem>>, vector<32x128xf32>
    tpu.vector_store %arg8[%c0_17, %c0_18], %19 {strides = array<i32>} : memref<32x128xf32, #tpu.memory_space<vmem>>, vector<32x128xf32>,
    return
  }
  func.func @transform_0(%arg0: i32) -> (i32, i32) {
    %c0_i32 = arith.constant 0 : i32
    %c0_i32_0 = arith.constant 0 : i32
    return %arg0, %c0_i32 : i32, i32
  }
  func.func @transform_1(%arg0: i32) -> (i32, i32) {
    %c0_i32 = arith.constant 0 : i32
    %c0_i32_0 = arith.constant 0 : i32
    %c0_i32_1 = arith.constant 0 : i32
    return %c0_i32, %c0_i32_0 : i32, i32
  }
  func.func @transform_2(%arg0: i32) -> (i32, i32) {
    %c0_i32 = arith.constant 0 : i32
    %c0_i32_0 = arith.constant 0 : i32
    %c0_i32_1 = arith.constant 0 : i32
    return %c0_i32, %c0_i32_0 : i32, i32
  }
  func.func @transform_3(%arg0: i32) -> (i32, i32) {
    %c0_i32 = arith.constant 0 : i32
    %c0_i32_0 = arith.constant 0 : i32
    %c0_i32_1 = arith.constant 0 : i32
    return %c0_i32, %c0_i32_0 : i32, i32
  }
  func.func @transform_4(%arg0: i32) -> (i32, i32) {
    %c0_i32 = arith.constant 0 : i32
    %c0_i32_0 = arith.constant 0 : i32
    %c0_i32_1 = arith.constant 0 : i32
    return %c0_i32, %c0_i32_0 : i32, i32
  }
  func.func @transform_5(%arg0: i32) -> (i32, i32) {
    %c0_i32 = arith.constant 0 : i32
    %c0_i32_0 = arith.constant 0 : i32
    %c0_i32_1 = arith.constant 0 : i32
    return %c0_i32, %c0_i32_0 : i32, i32
  }
  func.func @transform_6(%arg0: i32) -> (i32, i32) {
    %c0_i32 = arith.constant 0 : i32
    %c0_i32_0 = arith.constant 0 : i32
    %c0_i32_1 = arith.constant 0 : i32
    return %c0_i32, %c0_i32_0 : i32, i32
  }
  func.func @transform_7(%arg0: i32) -> (i32, i32) {
    %c0_i32 = arith.constant 0 : i32
    %c0_i32_0 = arith.constant 0 : i32
    return %arg0, %c0_i32 : i32, i32
  }
}

</mosaic_0001>

<llo_original>
// kernel: pairnet_forward.1
$region0: #{pairnet_forward.1}
  #allocation0 [shape = 'u32[]', space=smem, size = 0x4, offset = 0x4, fixed_abs, tag = 'smem constant byte address 0x4 - core index']
  #allocation1 [shape = 'u32[144,128]{1,0:T(1,128)}', space=vmem, size = 0x12000, scoped, tag = 'internal scratch']
  %s0 = inlined_call_operand.vmem [shape: f32[64,32], index: 0, kind: input, shape index: {}]
  %s1 = inlined_call_operand.hbm [shape: f32[32,512], index: 1, kind: input, shape index: {}]
  %s2 = inlined_call_operand.vmem [shape: f32[1,512], index: 2, kind: input, shape index: {}]
  %s3 = inlined_call_operand.hbm [shape: f32[512,256], index: 3, kind: input, shape index: {}]
  %s4 = inlined_call_operand.vmem [shape: f32[1,256], index: 4, kind: input, shape index: {}]
  %s5 = inlined_call_operand.hbm [shape: f32[256,128], index: 5, kind: input, shape index: {}]
  %s6 = inlined_call_operand.vmem [shape: f32[1,128], index: 6, kind: input, shape index: {}]
  %s7 = inlined_call_operand.vmem [shape: f32[64,128], index: 7, kind: output, shape index: {}]
  %s8 = sld [smem:[#allocation0]]
  $region73: #{pairnet_forward.1} parent=0
    _
  %s10 = ssub.s32 1, %s8
  %s11 = scalar_select 0, %s10, %s8
  $region1: #{pairnet_forward.1} parent=0
    #allocation2 [shape = 'u8[65536]{0}', space=vmem, size = 0x10000, scoped, tag = 'input window, operand 1, single buffered']
    #allocation3 [shape = 's32[2]{0}', space=sflag, size = 0x8, scoped, tag = 'scoped memory for pairnet_forward.1']
    #allocation4 [shape = 'u8[524288]{0}', space=vmem, size = 0x80000, scoped, tag = 'input window, operand 3, single buffered']
    #allocation5 [shape = 's32[1]{0}', space=sflag, size = 0x4, scoped, tag = 'scoped memory for pairnet_forward.1']
    #allocation6 [shape = 'u8[131072]{0}', space=vmem, size = 0x20000, scoped, tag = 'input window, operand 5, single buffered']
    %12 = vsyncpa [#allocation3], 0
    %13 = vsyncpa [#allocation5], 0
    loop: start=0, step=1, limit=4
    $region2: #{pairnet_forward.1} parent=1 // loop_pre_header
      _
    $region3: #{pairnet_forward.1} parent=1 // loop_header
      %s15 = sphi 0, %s19
      %p16 = scmp.ge.s32.totalorder %s15, 4
      %s25 = sphi 0, %s27
      %s28 = sphi 0, %s25
      %s29 = sphi 0, %s28
      %s45 = sphi 0, %s29
      %s49 = sphi 0, %s49
      %s51 = sphi 0, %s49
      %s52 = sphi 0, %s51
      %s66 = sphi 0, %s52
      %s70 = sphi 0, %s70
      %s72 = sphi 0, %s70
      %s73 = sphi 0, %s72
      %s87 = sphi 0, %s73
      %s91 = sphi 0, %s91
      %s93 = sphi 0, %s91
      %s94 = sphi 0, %s93
      %s108 = sphi 0, %s94
      %s112 = sphi 0, %s112
      %s114 = sphi 0, %s112
      %s115 = sphi 0, %s114
      %s129 = sphi 0, %s115
      %s133 = sphi 0, %s133
      %s135 = sphi 0, %s133
      %s136 = sphi 0, %s135
      %s150 = sphi 0, %s136
      %s154 = sphi 0, %s154
      %s156 = sphi 0, %s154
      %s157 = sphi 0, %s156
      %s171 = sphi 0, %s157
      %s177 = sphi 0, %s179
      %s180 = sphi 0, %s177
      %s181 = sphi 0, %s180
      %s197 = sphi 0, %s181
    $region4: #{pairnet_forward.1} parent=1 // loop_header_branch
      %18 = sbr.rel (%p16) target = $region8
    $region5: #{pairnet_forward.1} parent=1 // loop_body
      %s20 = ssub.s32 %s15, 1
      %s21 = ssub.s32 %s15, 2
      %s22 = sadd.s32 %s15, 1
      %s23 = ssub.s32 %s15, %s22
      %p24 = scmp.eq.s32.totalorder %s23, 0
      %s26 = sadd.s32 %s25, 1
      %s27 = scalar_select %p24, %s25, %s26
      %p30 = pneg %p24
      %p31 = scmp.eq.s32.totalorder %s15, 1
      %p32 = por %p30, %p31
      %p33 = scmp.ne.s32.totalorder %s25, %s28
      %p34 = scmp.eq.s32.totalorder %s15, 0
      %p35 = por %p33, %p34
      %p36 = scmp.ne.s32.totalorder %s25, %s28
      %p37 = scmp.eq.s32.totalorder %s20, 1
      %p38 = por %p36, %p37
      %p39 = scmp.ne.s32.totalorder %s28, %s29
      %p40 = scmp.eq.s32.totalorder %s20, 0
      %p41 = por %p39, %p40
      %p42 = scmp.ne.s32.totalorder %s28, %s29
      %p43 = scmp.eq.s32.totalorder %s21, 1
      %p44 = por %p42, %p43
      %p46 = scmp.ne.s32.totalorder %s29, %s45
      %p47 = scmp.eq.s32.totalorder %s21, 0
      %p48 = por %p46, %p47
      %s50 = sadd.s32 %s49, 1
      %p53 = scmp.eq.s32.totalorder %s15, 1
      %p54 = scmp.ne.s32.totalorder %s49, %s51
      %p55 = scmp.eq.s32.totalorder %s15, 0
      %p56 = por %p54, %p55
      %p57 = scmp.ne.s32.totalorder %s49, %s51
      %p58 = scmp.eq.s32.totalorder %s20, 1
      %p59 = por %p57, %p58
      %p60 = scmp.ne.s32.totalorder %s51, %s52
      %p61 = scmp.eq.s32.totalorder %s20, 0
      %p62 = por %p60, %p61
      %p63 = scmp.ne.s32.totalorder %s51, %s52
      %p64 = scmp.eq.s32.totalorder %s21, 1
      %p65 = por %p63, %p64
      %p67 = scmp.ne.s32.totalorder %s52, %s66
      %p68 = scmp.eq.s32.totalorder %s21, 0
      %p69 = por %p67, %p68
      %s71 = sadd.s32 %s70, 1
      %p74 = scmp.eq.s32.totalorder %s15, 1
      %p75 = scmp.ne.s32.totalorder %s70, %s72
      %p76 = scmp.eq.s32.totalorder %s15, 0
      %p77 = por %p75, %p76
      %p78 = scmp.ne.s32.totalorder %s70, %s72
      %p79 = scmp.eq.s32.totalorder %s20, 1
      %p80 = por %p78, %p79
      %p81 = scmp.ne.s32.totalorder %s72, %s73
      %p82 = scmp.eq.s32.totalorder %s20, 0
      %p83 = por %p81, %p82
      %p84 = scmp.ne.s32.totalorder %s72, %s73
      %p85 = scmp.eq.s32.totalorder %s21, 1
      %p86 = por %p84, %p85
      %p88 = scmp.ne.s32.totalorder %s73, %s87
      %p89 = scmp.eq.s32.totalorder %s21, 0
      %p90 = por %p88, %p89
      %s92 = sadd.s32 %s91, 1
      %p95 = scmp.eq.s32.totalorder %s15, 1
      %p96 = scmp.ne.s32.totalorder %s91, %s93
      %p97 = scmp.eq.s32.totalorder %s15, 0
      %p98 = por %p96, %p97
      %p99 = scmp.ne.s32.totalorder %s91, %s93
      %p100 = scmp.eq.s32.totalorder %s20, 1
      %p101 = por %p99, %p100
      %p102 = scmp.ne.s32.totalorder %s93, %s94
      %p103 = scmp.eq.s32.totalorder %s20, 0
      %p104 = por %p102, %p103
      %p105 = scmp.ne.s32.totalorder %s93, %s94
      %p106 = scmp.eq.s32.totalorder %s21, 1
      %p107 = por %p105, %p106
      %p109 = scmp.ne.s32.totalorder %s94, %s108
      %p110 = scmp.eq.s32.totalorder %s21, 0
      %p111 = por %p109, %p110
      %s113 = sadd.s32 %s112, 1
      %p116 = scmp.eq.s32.totalorder %s15, 1
      %p117 = scmp.ne.s32.totalorder %s112, %s114
      %p118 = scmp.eq.s32.totalorder %s15, 0
      %p119 = por %p117, %p118
      %p120 = scmp.ne.s32.totalorder %s112, %s114
      %p121 = scmp.eq.s32.totalorder %s20, 1
      %p122 = por %p120, %p121
      %p123 = scmp.ne.s32.totalorder %s114, %s115
      %p124 = scmp.eq.s32.totalorder %s20, 0
      %p125 = por %p123, %p124
      %p126 = scmp.ne.s32.totalorder %s114, %s115
      %p127 = scmp.eq.s32.totalorder %s21, 1
      %p128 = por %p126, %p127
      %p130 = scmp.ne.s32.totalorder %s115, %s129
      %p131 = scmp.eq.s32.totalorder %s21, 0
      %p132 = por %p130, %p131
      %s134 = sadd.s32 %s133, 1
      %p137 = scmp.eq.s32.totalorder %s15, 1
      %p138 = scmp.ne.s32.totalorder %s133, %s135
      %p139 = scmp.eq.s32.totalorder %s15, 0
      %p140 = por %p138, %p139
      %p141 = scmp.ne.s32.totalorder %s133, %s135
      %p142 = scmp.eq.s32.totalorder %s20, 1
      %p143 = por %p141, %p142
      %p144 = scmp.ne.s32.totalorder %s135, %s136
      %p145 = scmp.eq.s32.totalorder %s20, 0
      %p146 = por %p144, %p145
      %p147 = scmp.ne.s32.totalorder %s135, %s136
      %p148 = scmp.eq.s32.totalorder %s21, 1
      %p149 = por %p147, %p148
      %p151 = scmp.ne.s32.totalorder %s136, %s150
      %p152 = scmp.eq.s32.totalorder %s21, 0
      %p153 = por %p151, %p152
      %s155 = sadd.s32 %s154, 1
      %p158 = scmp.eq.s32.totalorder %s15, 1
      %p159 = scmp.ne.s32.totalorder %s154, %s156
      %p160 = scmp.eq.s32.totalorder %s15, 0
      %p161 = por %p159, %p160
      %p162 = scmp.ne.s32.totalorder %s154, %s156
      %p163 = scmp.eq.s32.totalorder %s20, 1
      %p164 = por %p162, %p163
      %p165 = scmp.ne.s32.totalorder %s156, %s157
      %p166 = scmp.eq.s32.totalorder %s20, 0
      %p167 = por %p165, %p166
      %p168 = scmp.ne.s32.totalorder %s156, %s157
      %p169 = scmp.eq.s32.totalorder %s21, 1
      %p170 = por %p168, %p169
      %p172 = scmp.ne.s32.totalorder %s157, %s171
      %p173 = scmp.eq.s32.totalorder %s21, 0
      %p174 = por %p172, %p173
      %s175 = ssub.s32 %s15, %s22
      %p176 = scmp.eq.s32.totalorder %s175, 0
      %s178 = sadd.s32 %s177, 1
      %s179 = scalar_select %p176, %s177, %s178
      %p182 = pneg %p176
      %p183 = scmp.eq.s32.totalorder %s15, 1
      %p184 = por %p182, %p183
      %p185 = scmp.ne.s32.totalorder %s177, %s180
      %p186 = scmp.eq.s32.totalorder %s15, 0
      %p187 = por %p185, %p186
      %p188 = scmp.ne.s32.totalorder %s177, %s180
      %p189 = scmp.eq.s32.totalorder %s20, 1
      %p190 = por %p188, %p189
      %p191 = scmp.ne.s32.totalorder %s180, %s181
      %p192 = scmp.eq.s32.totalorder %s20, 0
      %p193 = por %p191, %p192
      %p194 = scmp.ne.s32.totalorder %s180, %s181
      %p195 = scmp.eq.s32.totalorder %s21, 1
      %p196 = por %p194, %p195
      %p198 = scmp.ne.s32.totalorder %s181, %s197
      %p199 = scmp.eq.s32.totalorder %s21, 0
      %p200 = por %p198, %p199
      %p201 = scmp.le.s32.totalorder 1, %s15
      %p202 = scmp.lt.s32.totalorder %s15, 3
      %p203 = pnand %p201, %p202
      %p204 = pneg %p203
      // Predicated region
      $region9: #{pairnet_forward.1} parent=5 // pred_check
        _
      $region10: #{pairnet_forward.1} parent=5 // pred_check_branch
        %206 = sbr.rel (%p203) target = $region12
      $region11: #{pairnet_forward.1} parent=5 // pred_region
        %s207 = ssub.s32 %s15, 1
        // Predicated region
        $region13: #{pairnet_forward.1} parent=11 // pred_check
          %p208 = pneg %p62
        $region14: #{pairnet_forward.1} parent=11 // pred_check_branch
          %210 = sbr.rel (%p208) target = $region16
        $region15: #{pairnet_forward.1} parent=11 // pred_region
          %s212 = ssub.s32 2048, 2048
          %213 = vsyncadd [#allocation3], %s212
          %s214 = sshll.u32 [#allocation2], 4
          %s215 = int_to_ptr.vmem [resolvable:$true] %s214
          %220 = dma.hbm_to_vmem [thread:$0]  %s1, 2048, %s215, [#allocation3], 512, 512, 32
        $region16: #{pairnet_forward.1} parent=11 // pred_fallthru
          _
        // Predicated region
        $region17: #{pairnet_forward.1} parent=11 // pred_check
          %p221 = pneg %p83
        $region18: #{pairnet_forward.1} parent=11 // pred_check_branch
          %223 = sbr.rel (%p221) target = $region20
        $region19: #{pairnet_forward.1} parent=11 // pred_region
          _
        $region20: #{pairnet_forward.1} parent=11 // pred_fallthru
          _
        // Predicated region
        $region21: #{pairnet_forward.1} parent=11 // pred_check
          %p224 = pneg %p104
        $region22: #{pairnet_forward.1} parent=11 // pred_check_branch
          %226 = sbr.rel (%p224) target = $region24
        $region23: #{pairnet_forward.1} parent=11 // pred_region
          %s228 = ssub.s32 16384, 16384
          %229 = vsyncadd [#allocation5], %s228
          %s230 = sshll.u32 [#allocation4], 4
          %s231 = int_to_ptr.vmem [resolvable:$true] %s230
          %236 = dma.hbm_to_vmem [thread:$0]  %s3, 16384, %s231, [#allocation5], 256, 256, 16
        $region24: #{pairnet_forward.1} parent=11 // pred_fallthru
          _
        // Predicated region
        $region25: #{pairnet_forward.1} parent=11 // pred_check
          %p237 = pneg %p125
        $region26: #{pairnet_forward.1} parent=11 // pred_check_branch
          %239 = sbr.rel (%p237) target = $region28
        $region27: #{pairnet_forward.1} parent=11 // pred_region
          _
        $region28: #{pairnet_forward.1} parent=11 // pred_fallthru
          _
        // Predicated region
        $region29: #{pairnet_forward.1} parent=11 // pred_check
          %p240 = pneg %p146
        $region30: #{pairnet_forward.1} parent=11 // pred_check_branch
          %242 = sbr.rel (%p240) target = $region32
        $region31: #{pairnet_forward.1} parent=11 // pred_region
          %s244 = ssub.s32 4096, 4096
          %245 = vsyncadd [#allocation5], %s244
          %s246 = sshll.u32 [#allocation6], 4
          %s247 = int_to_ptr.vmem [resolvable:$true] %s246
          %252 = dma.hbm_to_vmem [thread:$0]  %s5, 4096, %s247, [#allocation5], 128, 128, 8
        $region32: #{pairnet_forward.1} parent=11 // pred_fallthru
          _
        // Predicated region
        $region33: #{pairnet_forward.1} parent=11 // pred_check
          %p253 = pneg %p167
        $region34: #{pairnet_forward.1} parent=11 // pred_check_branch
          %255 = sbr.rel (%p253) target = $region36
        $region35: #{pairnet_forward.1} parent=11 // pred_region
          _
        $region36: #{pairnet_forward.1} parent=11 // pred_fallthru
          _
      $region12: #{pairnet_forward.1} parent=5 // pred_fallthru
        _
      %p256 = scmp.lt.s32.totalorder %s15, 2
      // Predicated region
      $region37: #{pairnet_forward.1} parent=5 // pred_check
        %p257 = pneg %p256
      $region38: #{pairnet_forward.1} parent=5 // pred_check_branch
        %259 = sbr.rel (%p257) target = $region40
      $region39: #{pairnet_forward.1} parent=5 // pred_region
        // Predicated region
        $region41: #{pairnet_forward.1} parent=39 // pred_check
          %p260 = pneg %p35
        $region42: #{pairnet_forward.1} parent=39 // pred_check_branch
          %262 = sbr.rel (%p260) target = $region44
        $region43: #{pairnet_forward.1} parent=39 // pred_region
          %s263 = smul.u32 4, %s15
          %p264 = scmp.lt.s32.totalorder %s263, 7
          %s265 = scalar_select %p264, %s263, 7
          %s266 = smul.addr %s265, 8
          %s267 = scalar_lea.vmem %s0, %s266
          %s268 = smul.u32 4, %s15
        $region44: #{pairnet_forward.1} parent=39 // pred_fallthru
          _
      $region40: #{pairnet_forward.1} parent=5 // pred_fallthru
        _
      %p269 = scmp.le.s32.totalorder 1, %s15
      %p270 = scmp.lt.s32.totalorder %s15, 3
      %p271 = pnand %p269, %p270
      %p272 = pneg %p271
      // Predicated region
      $region45: #{pairnet_forward.1} parent=5 // pred_check
        _
      $region46: #{pairnet_forward.1} parent=5 // pred_check_branch
        %274 = sbr.rel (%p271) target = $region48
      $region47: #{pairnet_forward.1} parent=5 // pred_region
        %s275 = ssub.s32 %s15, 1
        // Predicated region
        $region49: #{pairnet_forward.1} parent=47 // pred_check
          %p276 = pneg %p62
        $region50: #{pairnet_forward.1} parent=47 // pred_check_branch
          %278 = sbr.rel (%p276) target = $region52
        $region51: #{pairnet_forward.1} parent=47 // pred_region
          %279 = dma.done [#allocation3], 2048
        $region52: #{pairnet_forward.1} parent=47 // pred_fallthru
          _
        // Predicated region
        $region53: #{pairnet_forward.1} parent=47 // pred_check
          %p280 = pneg %p104
        $region54: #{pairnet_forward.1} parent=47 // pred_check_branch
          %282 = sbr.rel (%p280) target = $region56
        $region55: #{pairnet_forward.1} parent=47 // pred_region
          %283 = dma.done [#allocation5], 16384
        $region56: #{pairnet_forward.1} parent=47 // pred_fallthru
          _
        // Predicated region
        $region57: #{pairnet_forward.1} parent=47 // pred_check
          %p284 = pneg %p146
        $region58: #{pairnet_forward.1} parent=47 // pred_check_branch
          %286 = sbr.rel (%p284) target = $region60
        $region59: #{pairnet_forward.1} parent=47 // pred_region
          %287 = dma.done [#allocation5], 4096
        $region60: #{pairnet_forward.1} parent=47 // pred_fallthru
          _
        %s288 = smul.u32 4, %s20
        %p289 = scmp.lt.s32.totalorder %s288, 7
        %s290 = scalar_select %p289, %s288, 7
        %s291 = smul.addr %s290, 8
        %s292 = scalar_lea.vmem %s0, %s291
        %p293 = pneg %p41
        %p294 = pneg %p38
        %p295 = pneg %p62
        %p296 = pneg %p59
        %p297 = pneg %p83
        %p298 = pneg %p80
        %p299 = pneg %p104
        %p300 = pneg %p101
        %p301 = pneg %p125
        %p302 = pneg %p122
        %p303 = pneg %p146
        %p304 = pneg %p143
        %p305 = pneg %p167
        %p306 = pneg %p164
        %p307 = pneg %p193
        %p308 = pneg %p190
        %s309 = smul.u32 4, %s20
        %p310 = scmp.lt.s32.totalorder %s309, 7
        %s311 = scalar_select %p310, %s309, 7
        %s312 = smul.addr %s311, 8
        %s313 = scalar_lea.vmem %s7, %s312
        %s314 = smul.u32 4, %s20
        %p315 = scmp.lt.s32.totalorder %s314, 7
        %s316 = scalar_select %p315, %s314, 7
        %s317 = smul.addr %s316, 8
        %s318 = scalar_lea.vmem %s0, %s317
        %s319 = smul.u32 4, %s20
        %s320 = smul.u32 4, %s20
        %p321 = scmp.lt.s32.totalorder %s320, 7
        %s322 = scalar_select %p321, %s320, 7
        %s323 = smul.addr %s322, 8
        %s324 = scalar_lea.vmem %s7, %s323
        %s325 = smul.u32 4, %s20
        %v326 = vld [vmem:[%s318] sm:$0xff]
        %v327 = vld [vmem:[%s318 + $0x8] sm:$0xff]
        %v328 = vld [vmem:[%s318 + $0x10] sm:$0xff]
        %v329 = vld [vmem:[%s318 + $0x18] sm:$0xff]
        %v330 = vld [vmem:[#allocation2] sm:$0xff]
        %v331 = vld [vmem:[#allocation2 + $0x8] sm:$0xff]
        %v332 = vld [vmem:[#allocation2 + $0x10] sm:$0xff]
        %v333 = vld [vmem:[#allocation2 + $0x18] sm:$0xff]
        %v334 = vld [vmem:[#allocation2 + $0x20] sm:$0xff]
        %v335 = vld [vmem:[#allocation2 + $0x28] sm:$0xff]
        %v336 = vld [vmem:[#allocation2 + $0x30] sm:$0xff]
        %v337 = vld [vmem:[#allocation2 + $0x38] sm:$0xff]
        %v338 = vld [vmem:[#allocation2 + $0x40] sm:$0xff]
        %v339 = vld [vmem:[#allocation2 + $0x48] sm:$0xff]
        %v340 = vld [vmem:[#allocation2 + $0x50] sm:$0xff]
        %v341 = vld [vmem:[#allocation2 + $0x58] sm:$0xff]
        %v342 = vld [vmem:[#allocation2 + $0x60] sm:$0xff]
        %v343 = vld [vmem:[#allocation2 + $0x68] sm:$0xff]
        %v344 = vld [vmem:[#allocation2 + $0x70] sm:$0xff]
        %v345 = vld [vmem:[#allocation2 + $0x78] sm:$0xff]
        %v346 = vld [vmem:[%s2] sm:$0xf]
        %v348 = vlaneseq
        %v349 = vshrl.u32 %v348, 7
        %v350 = vsub.s32 0, %v349
        %v351 = vrot.slane %v346, %v350
        %v352 = vlaneseq
        %v353 = vshrl.u32 %v352, 7
        %v354 = vsub.s32 1, %v353
        %v355 = vrot.slane %v346, %v354
        %v356 = vlaneseq
        %v357 = vshrl.u32 %v356, 7
        %v358 = vsub.s32 2, %v357
        %v359 = vrot.slane %v346, %v358
        %v360 = vlaneseq
        %v361 = vshrl.u32 %v360, 7
        %v362 = vsub.s32 3, %v361
        %v363 = vrot.slane %v346, %v362
        %vm368 = vcmask 261120
        %v370 = vsel %vm368, %v326, 0
        %v373 = vsel %vm368, %v327, 0
        %v376 = vsel %vm368, %v328, 0
        %v379 = vsel %vm368, %v329, 0
        %381 = vmatprep.subr.mxu0 %v331
        %382 = vmatpush1.msra.mxu0 %v330
        %383 = vmatprep.subr.mxu0 %v335
        %384 = vmatpush1.msra.mxu0 %v334
        %385 = vmatprep.subr.mxu0 %v339
        %386 = vmatpush1.msra.mxu0 %v338
        %387 = vmatprep.subr.mxu0 %v343
        %388 = vmatpush1.msra.mxu0 %v342
        %389 = vmatprep.subr.mxu0 0.0
        %390 = vmatpush1.msra.mxu0 0.0
        %391 = vmatprep.subr.mxu0 0.0
        %392 = vmatpush1.msra.mxu0 0.0
        %393 = vmatprep.subr.mxu0 0.0
        %394 = vmatpush1.msra.mxu0 0.0
        %395 = vmatprep.subr.mxu0 0.0
        %396 = vmatpush1.msra.mxu0 0.0
        %397 = vmatprep.subr.mxu0 0.0
        %398 = vmatpush1.msra.mxu0 0.0
        %399 = vmatprep.subr.mxu0 0.0
        %400 = vmatpush1.msra.mxu0 0.0
        %401 = vmatprep.subr.mxu0 0.0
        %402 = vmatpush1.msra.mxu0 0.0
        %403 = vmatprep.subr.mxu0 0.0
        %404 = vmatpush1.msra.mxu0 0.0
        %405 = vmatprep.subr.mxu0 0.0
        %406 = vmatpush1.msra.mxu0 0.0
        %407 = vmatprep.subr.mxu0 0.0
        %408 = vmatpush1.msra.mxu0 0.0
        %409 = vmatprep.subr.mxu0 0.0
        %410 = vmatpush1.msra.mxu0 0.0
        %411 = vmatprep.subr.mxu0 0.0
        %412 = vmatpush1.msra.mxu0 0.0
        %413 = vmatprep.subr.mxu0 0.0
        %414 = vmatpush1.msra.mxu0 0.0
        %415 = vmatprep.subr.mxu0 0.0
        %416 = vmatpush1.msra.mxu0 0.0
        %417 = vmatprep.subr.mxu0 0.0
        %418 = vmatpush1.msra.mxu0 0.0
        %419 = vmatprep.subr.mxu0 0.0
        %420 = vmatpush1.msra.mxu0 0.0
        %421 = vmatprep.subr.mxu0 0.0
        %422 = vmatpush1.msra.mxu0 0.0
        %423 = vmatprep.subr.mxu0 0.0
        %424 = vmatpush1.msra.mxu0 0.0
        %425 = vmatprep.subr.mxu0 0.0
        %426 = vmatpush1.msra.mxu0 0.0
        %427 = vmatprep.subr.mxu0 0.0
        %428 = vmatpush1.msra.mxu0 0.0
        %429 = vmatprep.subr.mxu0 0.0
        %430 = vmatpush1.msra.mxu0 0.0
        %431 = vmatprep.subr.mxu0 0.0
        %432 = vmatpush1.msra.mxu0 0.0
        %433 = vmatprep.subr.mxu0 0.0
        %434 = vmatpush1.msra.mxu0 0.0
        %435 = vmatprep.subr.mxu0 0.0
        %436 = vmatpush1.msra.mxu0 0.0
        %437 = vmatprep.subr.mxu0 0.0
        %438 = vmatpush1.msra.mxu0 0.0
        %439 = vmatprep.subr.mxu0 0.0
        %440 = vmatpush1.msra.mxu0 0.0
        %441 = vmatprep.subr.mxu0 0.0
        %442 = vmatpush1.msra.mxu0 0.0
        %443 = vmatprep.subr.mxu0 0.0
        %444 = vmatpush1.msra.mxu0 0.0
        %445 = vmatprep.mubr.f32.mxu0 0.0
        %446 = vmatmul.mubr.f32.gmra.mrb[0].mxu0 %v370
        %v447 = vpop.f32.mrb[0].mxu0
        %v448 = vadd.f32 %v351, %v447
        %v449 = vpop.f32.mrb[0].mxu0
        %v450 = vadd.f32 %v355, %v449
        %451 = vmatprep.mubr.f32.mxu0 0.0
        %452 = vmatmul.mubr.f32.gmra.mrb[0].mxu0 %v373
        %v453 = vpop.f32.mrb[0].mxu0
        %v454 = vadd.f32 %v351, %v453
        %v455 = vpop.f32.mrb[0].mxu0
        %v456 = vadd.f32 %v355, %v455
        %457 = vmatprep.mubr.f32.mxu0 0.0
        %458 = vmatmul.mubr.f32.gmra.mrb[0].mxu0 %v376
        %v459 = vpop.f32.mrb[0].mxu0
        %v460 = vadd.f32 %v351, %v459
        %v461 = vpop.f32.mrb[0].mxu0
        %v462 = vadd.f32 %v355, %v461
        %463 = vmatprep.mubr.f32.mxu0 0.0
        %464 = vmatmul.mubr.f32.gmra.mrb[0].mxu0 %v379
        %v465 = vpop.f32.mrb[0].mxu0
        %v466 = vadd.f32 %v351, %v465
        %v467 = vpop.f32.mrb[0].mxu0
        %v468 = vadd.f32 %v355, %v467
        %469 = vdwg.mxu0
        %470 = vmatprep.subr.mxu0 %v333
        %471 = vmatpush1.msra.mxu0 %v332
        %472 = vmatprep.subr.mxu0 %v337
        %473 = vmatpush1.msra.mxu0 %v336
        %474 = vmatprep.subr.mxu0 %v341
        %475 = vmatpush1.msra.mxu0 %v340
        %476 = vmatprep.subr.mxu0 %v345
        %477 = vmatpush1.msra.mxu0 %v344
        %478 = vmatprep.subr.mxu0 0.0
        %479 = vmatpush1.msra.mxu0 0.0
        %480 = vmatprep.subr.mxu0 0.0
        %481 = vmatpush1.msra.mxu0 0.0
        %482 = vmatprep.subr.mxu0 0.0
        %483 = vmatpush1.msra.mxu0 0.0
        %484 = vmatprep.subr.mxu0 0.0
        %485 = vmatpush1.msra.mxu0 0.0
        %486 = vmatprep.subr.mxu0 0.0
        %487 = vmatpush1.msra.mxu0 0.0
        %488 = vmatprep.subr.mxu0 0.0
        %489 = vmatpush1.msra.mxu0 0.0
        %490 = vmatprep.subr.mxu0 0.0
        %491 = vmatpush1.msra.mxu0 0.0
        %492 = vmatprep.subr.mxu0 0.0
        %493 = vmatpush1.msra.mxu0 0.0
        %494 = vmatprep.subr.mxu0 0.0
        %495 = vmatpush1.msra.mxu0 0.0
        %496 = vmatprep.subr.mxu0 0.0
        %497 = vmatpush1.msra.mxu0 0.0
        %498 = vmatprep.subr.mxu0 0.0
        %499 = vmatpush1.msra.mxu0 0.0
        %500 = vmatprep.subr.mxu0 0.0
        %501 = vmatpush1.msra.mxu0 0.0
        %502 = vmatprep.subr.mxu0 0.0
        %503 = vmatpush1.msra.mxu0 0.0
        %504 = vmatprep.subr.mxu0 0.0
        %505 = vmatpush1.msra.mxu0 0.0
        %506 = vmatprep.subr.mxu0 0.0
        %507 = vmatpush1.msra.mxu0 0.0
        %508 = vmatprep.subr.mxu0 0.0
        %509 = vmatpush1.msra.mxu0 0.0
        %510 = vmatprep.subr.mxu0 0.0
        %511 = vmatpush1.msra.mxu0 0.0
        %512 = vmatprep.subr.mxu0 0.0
        %513 = vmatpush1.msra.mxu0 0.0
        %514 = vmatprep.subr.mxu0 0.0
        %515 = vmatpush1.msra.mxu0 0.0
        %516 = vmatprep.subr.mxu0 0.0
        %517 = vmatpush1.msra.mxu0 0.0
        %518 = vmatprep.subr.mxu0 0.0
        %519 = vmatpush1.msra.mxu0 0.0
        %520 = vmatprep.subr.mxu0 0.0
        %521 = vmatpush1.msra.mxu0 0.0
        %522 = vmatprep.subr.mxu0 0.0
        %523 = vmatpush1.msra.mxu0 0.0
        %524 = vmatprep.subr.mxu0 0.0
        %525 = vmatpush1.msra.mxu0 0.0
        %526 = vmatprep.subr.mxu0 0.0
        %527 = vmatpush1.msra.mxu0 0.0
        %528 = vmatprep.subr.mxu0 0.0
        %529 = vmatpush1.msra.mxu0 0.0
        %530 = vmatprep.subr.mxu0 0.0
        %531 = vmatpush1.msra.mxu0 0.0
        %532 = vmatprep.subr.mxu0 0.0
        %533 = vmatpush1.msra.mxu0 0.0
        %534 = vmatprep.mubr.f32.mxu0 0.0
        %535 = vmatmul.mubr.f32.gmra.mrb[0].mxu0 %v370
        %v536 = vpop.f32.mrb[0].mxu0
        %v537 = vadd.f32 %v359, %v536
        %v538 = vpop.f32.mrb[0].mxu0
        %v539 = vadd.f32 %v363, %v538
        %540 = vmatprep.mubr.f32.mxu0 0.0
        %541 = vmatmul.mubr.f32.gmra.mrb[0].mxu0 %v373
        %v542 = vpop.f32.mrb[0].mxu0
        %v543 = vadd.f32 %v359, %v542
        %v544 = vpop.f32.mrb[0].mxu0
        %v545 = vadd.f32 %v363, %v544
        %546 = vmatprep.mubr.f32.mxu0 0.0
        %547 = vmatmul.mubr.f32.gmra.mrb[0].mxu0 %v376
        %v548 = vpop.f32.mrb[0].mxu0
        %v549 = vadd.f32 %v359, %v548
        %v550 = vpop.f32.mrb[0].mxu0
        %v551 = vadd.f32 %v363, %v550
        %552 = vmatprep.mubr.f32.mxu0 0.0
        %553 = vmatmul.mubr.f32.gmra.mrb[0].mxu0 %v379
        %v554 = vpop.f32.mrb[0].mxu0
        %v555 = vadd.f32 %v359, %v554
        %v556 = vpop.f32.mrb[0].mxu0
        %v557 = vadd.f32 %v363, %v556
        %558 = vdwg.mxu0
        %v559 = vmax.f32 %v448, 0.0
        %v560 = vmax.f32 %v450, 0.0
        %v561 = vmax.f32 %v537, 0.0
        %v562 = vmax.f32 %v539, 0.0
        %v563 = vmax.f32 %v454, 0.0
        %v564 = vmax.f32 %v456, 0.0
        %v565 = vmax.f32 %v543, 0.0
        %v566 = vmax.f32 %v545, 0.0
        %v567 = vmax.f32 %v460, 0.0
        %v568 = vmax.f32 %v462, 0.0
        %v569 = vmax.f32 %v549, 0.0
        %v570 = vmax.f32 %v551, 0.0
        %v571 = vmax.f32 %v466, 0.0
        %v572 = vmax.f32 %v468, 0.0
        %v573 = vmax.f32 %v555, 0.0
        %v574 = vmax.f32 %v557, 0.0
        %v575 = vld [vmem:[#allocation4] sm:$0xff]
        %v576 = vld [vmem:[#allocation4 + $0x8] sm:$0xff]
        %v577 = vld [vmem:[#allocation4 + $0x10] sm:$0xff]
        %v578 = vld [vmem:[#allocation4 + $0x18] sm:$0xff]
        %v579 = vld [vmem:[#allocation4 + $0x20] sm:$0xff]
        %v580 = vld [vmem:[#allocation4 + $0x28] sm:$0xff]
        %v581 = vld [vmem:[#allocation4 + $0x30] sm:$0xff]
        %v582 = vld [vmem:[#allocation4 + $0x38] sm:$0xff]
        %v583 = vld [vmem:[#allocation4 + $0x40] sm:$0xff]
        %v584 = vld [vmem:[#allocation4 + $0x48] sm:$0xff]
        %v585 = vld [vmem:[#allocation4 + $0x50] sm:$0xff]
        %v586 = vld [vmem:[#allocation4 + $0x58] sm:$0xff]
        %v587 = vld [vmem:[#allocation4 + $0x60] sm:$0xff]
        %v588 = vld [vmem:[#allocation4 + $0x68] sm:$0xff]
        %v589 = vld [vmem:[#allocation4 + $0x70] sm:$0xff]
        %v590 = vld [vmem:[#allocation4 + $0x78] sm:$0xff]
        %v591 = vld [vmem:[#allocation4 + $0x80] sm:$0xff]
        %v592 = vld [vmem:[#allocation4 + $0x88] sm:$0xff]
        %v593 = vld [vmem:[#allocation4 + $0x90] sm:$0xff]
        %v594 = vld [vmem:[#allocation4 + $0x98] sm:$0xff]
        %v595 = vld [vmem:[#allocation4 + $0xa0] sm:$0xff]
        %v596 = vld [vmem:[#allocation4 + $0xa8] sm:$0xff]
        %v597 = vld [vmem:[#allocation4 + $0xb0] sm:$0xff]
        %v598 = vld [vmem:[#allocation4 + $0xb8] sm:$0xff]
        %v599 = vld [vmem:[#allocation4 + $0xc0] sm:$0xff]
        %v600 = vld [vmem:[#allocation4 + $0xc8] sm:$0xff]
        %v601 = vld [vmem:[#allocation4 + $0xd0] sm:$0xff]
        %v602 = vld [vmem:[#allocation4 + $0xd8] sm:$0xff]
        %v603 = vld [vmem:[#allocation4 + $0xe0] sm:$0xff]
        %v604 = vld [vmem:[#allocation4 + $0xe8] sm:$0xff]
        %v605 = vld [vmem:[#allocation4 + $0xf0] sm:$0xff]
        %v606 = vld [vmem:[#allocation4 + $0xf8] sm:$0xff]
        %v607 = vld [vmem:[#allocation4 + $0x100] sm:$0xff]
        %v608 = vld [vmem:[#allocation4 + $0x108] sm:$0xff]
        %v609 = vld [vmem:[#allocation4 + $0x110] sm:$0xff]
        %v610 = vld [vmem:[#allocation4 + $0x118] sm:$0xff]
        %v611 = vld [vmem:[#allocation4 + $0x120] sm:$0xff]
        %v612 = vld [vmem:[#allocation4 + $0x128] sm:$0xff]
        %v613 = vld [vmem:[#allocation4 + $0x130] sm:$0xff]
        %v614 = vld [vmem:[#allocation4 + $0x138] sm:$0xff]
        %v615 = vld [vmem:[#allocation4 + $0x140] sm:$0xff]
        %v616 = vld [vmem:[#allocation4 + $0x148] sm:$0xff]
        %v617 = vld [vmem:[#allocation4 + $0x150] sm:$0xff]
        %v618 = vld [vmem:[#allocation4 + $0x158] sm:$0xff]
        %v619 = vld [vmem:[#allocation4 + $0x160] sm:$0xff]
        %v620 = vld [vmem:[#allocation4 + $0x168] sm:$0xff]
        %v621 = vld [vmem:[#allocation4 + $0x170] sm:$0xff]
        %v622 = vld [vmem:[#allocation4 + $0x178] sm:$0xff]
        %v623 = vld [vmem:[#allocation4 + $0x180] sm:$0xff]
        %v624 = vld [vmem:[#allocation4 + $0x188] sm:$0xff]
        %v625 = vld [vmem:[#allocation4 + $0x190] sm:$0xff]
        %v626 = vld [vmem:[#allocation4 + $0x198] sm:$0xff]
        %v627 = vld [vmem:[#allocation4 + $0x1a0] sm:$0xff]
        %v628 = vld [vmem:[#allocation4 + $0x1a8] sm:$0xff]
        %v629 = vld [vmem:[#allocation4 + $0x1b0] sm:$0xff]
        %v630 = vld [vmem:[#allocation4 + $0x1b8] sm:$0xff]
        %v631 = vld [vmem:[#allocation4 + $0x1c0] sm:$0xff]
        %v632 = vld [vmem:[#allocation4 + $0x1c8] sm:$0xff]
        %v633 = vld [vmem:[#allocation4 + $0x1d0] sm:$0xff]
        %v634 = vld [vmem:[#allocation4 + $0x1d8] sm:$0xff]
        %v635 = vld [vmem:[#allocation4 + $0x1e0] sm:$0xff]
        %v636 = vld [vmem:[#allocation4 + $0x1e8] sm:$0xff]
        %v637 = vld [vmem:[#allocation4 + $0x1f0] sm:$0xff]
        %v638 = vld [vmem:[#allocation4 + $0x1f8] sm:$0xff]
        %v639 = vld [vmem:[#allocation4 + $0x200] sm:$0xff]
        %v640 = vld [vmem:[#allocation4 + $0x208] sm:$0xff]
        %v641 = vld [vmem:[#allocation4 + $0x210] sm:$0xff]
        %v642 = vld [vmem:[#allocation4 + $0x218] sm:$0xff]
        %v643 = vld [vmem:[#allocation4 + $0x220] sm:$0xff]
        %v644 = vld [vmem:[#allocation4 + $0x228] sm:$0xff]
        %v645 = vld [vmem:[#allocation4 + $0x230] sm:$0xff]
        %v646 = vld [vmem:[#allocation4 + $0x238] sm:$0xff]
        %v647 = vld [vmem:[#allocation4 + $0x240] sm:$0xff]
        %v648 = vld [vmem:[#allocation4 + $0x248] sm:$0xff]
        %v649 = vld [vmem:[#allocation4 + $0x250] sm:$0xff]
        %v650 = vld [vmem:[#allocation4 + $0x258] sm:$0xff]
        %v651 = vld [vmem:[#allocation4 + $0x260] sm:$0xff]
        %v652 = vld [vmem:[#allocation4 + $0x268] sm:$0xff]
        %v653 = vld [vmem:[#allocation4 + $0x270] sm:$0xff]
        %v654 = vld [vmem:[#allocation4 + $0x278] sm:$0xff]
        %v655 = vld [vmem:[#allocation4 + $0x280] sm:$0xff]
        %v656 = vld [vmem:[#allocation4 + $0x288] sm:$0xff]
        %v657 = vld [vmem:[#allocation4 + $0x290] sm:$0xff]
        %v658 = vld [vmem:[#allocation4 + $0x298] sm:$0xff]
        %v659 = vld [vmem:[#allocation4 + $0x2a0] sm:$0xff]
        %v660 = vld [vmem:[#allocation4 + $0x2a8] sm:$0xff]
        %v661 = vld [vmem:[#allocation4 + $0x2b0] sm:$0xff]
        %v662 = vld [vmem:[#allocation4 + $0x2b8] sm:$0xff]
        %v663 = vld [vmem:[#allocation4 + $0x2c0] sm:$0xff]
        %v664 = vld [vmem:[#allocation4 + $0x2c8] sm:$0xff]
        %v665 = vld [vmem:[#allocation4 + $0x2d0] sm:$0xff]
        %v666 = vld [vmem:[#allocation4 + $0x2d8] sm:$0xff]
        %v667 = vld [vmem:[#allocation4 + $0x2e0] sm:$0xff]
        %v668 = vld [vmem:[#allocation4 + $0x2e8] sm:$0xff]
        %v669 = vld [vmem:[#allocation4 + $0x2f0] sm:$0xff]
        %v670 = vld [vmem:[#allocation4 + $0x2f8] sm:$0xff]
        %v671 = vld [vmem:[#allocation4 + $0x300] sm:$0xff]
        %v672 = vld [vmem:[#allocation4 + $0x308] sm:$0xff]
        %v673 = vld [vmem:[#allocation4 + $0x310] sm:$0xff]
        %v674 = vld [vmem:[#allocation4 + $0x318] sm:$0xff]
        %v675 = vld [vmem:[#allocation4 + $0x320] sm:$0xff]
        %v676 = vld [vmem:[#allocation4 + $0x328] sm:$0xff]
        %v677 = vld [vmem:[#allocation4 + $0x330] sm:$0xff]
        %v678 = vld [vmem:[#allocation4 + $0x338] sm:$0xff]
        %v679 = vld [vmem:[#allocation4 + $0x340] sm:$0xff]
        %v680 = vld [vmem:[#allocation4 + $0x348] sm:$0xff]
        %v681 = vld [vmem:[#allocation4 + $0x350] sm:$0xff]
        %v682 = vld [vmem:[#allocation4 + $0x358] sm:$0xff]
        %v683 = vld [vmem:[#allocation4 + $0x360] sm:$0xff]
        %v684 = vld [vmem:[#allocation4 + $0x368] sm:$0xff]
        %v685 = vld [vmem:[#allocation4 + $0x370] sm:$0xff]
        %v686 = vld [vmem:[#allocation4 + $0x378] sm:$0xff]
        %v687 = vld [vmem:[#allocation4 + $0x380] sm:$0xff]
        %v688 = vld [vmem:[#allocation4 + $0x388] sm:$0xff]
        %v689 = vld [vmem:[#allocation4 + $0x390] sm:$0xff]
        %v690 = vld [vmem:[#allocation4 + $0x398] sm:$0xff]
        %v691 = vld [vmem:[#allocation4 + $0x3a0] sm:$0xff]
        %v692 = vld [vmem:[#allocation4 + $0x3a8] sm:$0xff]
        %v693 = vld [vmem:[#allocation4 + $0x3b0] sm:$0xff]
        %v694 = vld [vmem:[#allocation4 + $0x3b8] sm:$0xff]
        %v695 = vld [vmem:[#allocation4 + $0x3c0] sm:$0xff]
        %v696 = vld [vmem:[#allocation4 + $0x3c8] sm:$0xff]
        %v697 = vld [vmem:[#allocation4 + $0x3d0] sm:$0xff]
        %v698 = vld [vmem:[#allocation4 + $0x3d8] sm:$0xff]
        %v699 = vld [vmem:[#allocation4 + $0x3e0] sm:$0xff]
        %v700 = vld [vmem:[#allocation4 + $0x3e8] sm:$0xff]
        %v701 = vld [vmem:[#allocation4 + $0x3f0] sm:$0xff]
        %v702 = vld [vmem:[#allocation4 + $0x3f8] sm:$0xff]
        %v703 = vld [vmem:[%s4] sm:$0x3]
        %v705 = vlaneseq
        %v706 = vshrl.u32 %v705, 7
        %v707 = vsub.s32 0, %v706
        %v708 = vrot.slane %v703, %v707
        %v709 = vlaneseq
        %v710 = vshrl.u32 %v709, 7
        %v711 = vsub.s32 1, %v710
        %v712 = vrot.slane %v703, %v711
        %715 = vmatprep.subr.mxu0 %v576
        %716 = vmatpush1.msra.mxu0 %v575
        %717 = vmatprep.subr.mxu0 %v578
        %718 = vmatpush1.msra.mxu0 %v577
        %719 = vmatprep.subr.mxu0 %v580
        %720 = vmatpush1.msra.mxu0 %v579
        %721 = vmatprep.subr.mxu0 %v582
        %722 = vmatpush1.msra.mxu0 %v581
        %723 = vmatprep.subr.mxu0 %v584
        %724 = vmatpush1.msra.mxu0 %v583
        %725 = vmatprep.subr.mxu0 %v586
        %726 = vmatpush1.msra.mxu0 %v585
        %727 = vmatprep.subr.mxu0 %v588
        %728 = vmatpush1.msra.mxu0 %v587
        %729 = vmatprep.subr.mxu0 %v590
        %730 = vmatpush1.msra.mxu0 %v589
        %731 = vmatprep.subr.mxu0 %v592
        %732 = vmatpush1.msra.mxu0 %v591
        %733 = vmatprep.subr.mxu0 %v594
        %734 = vmatpush1.msra.mxu0 %v593
        %735 = vmatprep.subr.mxu0 %v596
        %736 = vmatpush1.msra.mxu0 %v595
        %737 = vmatprep.subr.mxu0 %v598
        %738 = vmatpush1.msra.mxu0 %v597
        %739 = vmatprep.subr.mxu0 %v600
        %740 = vmatpush1.msra.mxu0 %v599
        %741 = vmatprep.subr.mxu0 %v602
        %742 = vmatpush1.msra.mxu0 %v601
        %743 = vmatprep.subr.mxu0 %v604
        %744 = vmatpush1.msra.mxu0 %v603
        %745 = vmatprep.subr.mxu0 %v606
        %746 = vmatpush1.msra.mxu0 %v605
        %747 = vmatprep.subr.mxu0 %v608
        %748 = vmatpush1.msra.mxu0 %v607
        %749 = vmatprep.subr.mxu0 %v610
        %750 = vmatpush1.msra.mxu0 %v609
        %751 = vmatprep.subr.mxu0 %v612
        %752 = vmatpush1.msra.mxu0 %v611
        %753 = vmatprep.subr.mxu0 %v614
        %754 = vmatpush1.msra.mxu0 %v613
        %755 = vmatprep.subr.mxu0 %v616
        %756 = vmatpush1.msra.mxu0 %v615
        %757 = vmatprep.subr.mxu0 %v618
        %758 = vmatpush1.msra.mxu0 %v617
        %759 = vmatprep.subr.mxu0 %v620
        %760 = vmatpush1.msra.mxu0 %v619
        %761 = vmatprep.subr.mxu0 %v622
        %762 = vmatpush1.msra.mxu0 %v621
        %763 = vmatprep.subr.mxu0 %v624
        %764 = vmatpush1.msra.mxu0 %v623
        %765 = vmatprep.subr.mxu0 %v626
        %766 = vmatpush1.msra.mxu0 %v625
        %767 = vmatprep.subr.mxu0 %v628
        %768 = vmatpush1.msra.mxu0 %v627
        %769 = vmatprep.subr.mxu0 %v630
        %770 = vmatpush1.msra.mxu0 %v629
        %771 = vmatprep.subr.mxu0 %v632
        %772 = vmatpush1.msra.mxu0 %v631
        %773 = vmatprep.subr.mxu0 %v634
        %774 = vmatpush1.msra.mxu0 %v633
        %775 = vmatprep.subr.mxu0 %v636
        %776 = vmatpush1.msra.mxu0 %v635
        %777 = vmatprep.subr.mxu0 %v638
        %778 = vmatpush1.msra.mxu0 %v637
        %779 = vmatprep.mubr.f32.mxu0 %v560
        %780 = vmatmul.mubr.f32.gmra.mrb[0].mxu0 %v559
        %v781 = vpop.f32.mrb[0].mxu0
        %v782 = vadd.f32 %v708, %v781
        %v783 = vpop.f32.mrb[0].mxu0
        %v784 = vadd.f32 %v712, %v783
        %785 = vmatprep.mubr.f32.mxu0 %v564
        %786 = vmatmul.mubr.f32.gmra.mrb[0].mxu0 %v563
        %v787 = vpop.f32.mrb[0].mxu0
        %v788 = vadd.f32 %v708, %v787
        %v789 = vpop.f32.mrb[0].mxu0
        %v790 = vadd.f32 %v712, %v789
        %791 = vmatprep.mubr.f32.mxu0 %v568
        %792 = vmatmul.mubr.f32.gmra.mrb[0].mxu0 %v567
        %v793 = vpop.f32.mrb[0].mxu0
        %v794 = vadd.f32 %v708, %v793
        %v795 = vpop.f32.mrb[0].mxu0
        %v796 = vadd.f32 %v712, %v795
        %797 = vmatprep.mubr.f32.mxu0 %v572
        %798 = vmatmul.mubr.f32.gmra.mrb[0].mxu0 %v571
        %v799 = vpop.f32.mrb[0].mxu0
        %v800 = vadd.f32 %v708, %v799
        %v801 = vpop.f32.mrb[0].mxu0
        %v802 = vadd.f32 %v712, %v801
        %803 = vdwg.mxu0
        %804 = vmatprep.subr.mxu0 %v640
        %805 = vmatpush1.msra.mxu0 %v639
        %806 = vmatprep.subr.mxu0 %v642
        %807 = vmatpush1.msra.mxu0 %v641
        %808 = vmatprep.subr.mxu0 %v644
        %809 = vmatpush1.msra.mxu0 %v643
        %810 = vmatprep.subr.mxu0 %v646
        %811 = vmatpush1.msra.mxu0 %v645
        %812 = vmatprep.subr.mxu0 %v648
        %813 = vmatpush1.msra.mxu0 %v647
        %814 = vmatprep.subr.mxu0 %v650
        %815 = vmatpush1.msra.mxu0 %v649
        %816 = vmatprep.subr.mxu0 %v652
        %817 = vmatpush1.msra.mxu0 %v651
        %818 = vmatprep.subr.mxu0 %v654
        %819 = vmatpush1.msra.mxu0 %v653
        %820 = vmatprep.subr.mxu0 %v656
        %821 = vmatpush1.msra.mxu0 %v655
        %822 = vmatprep.subr.mxu0 %v658
        %823 = vmatpush1.msra.mxu0 %v657
        %824 = vmatprep.subr.mxu0 %v660
        %825 = vmatpush1.msra.mxu0 %v659
        %826 = vmatprep.subr.mxu0 %v662
        %827 = vmatpush1.msra.mxu0 %v661
        %828 = vmatprep.subr.mxu0 %v664
        %829 = vmatpush1.msra.mxu0 %v663
        %830 = vmatprep.subr.mxu0 %v666
        %831 = vmatpush1.msra.mxu0 %v665
        %832 = vmatprep.subr.mxu0 %v668
        %833 = vmatpush1.msra.mxu0 %v667
        %834 = vmatprep.subr.mxu0 %v670
        %835 = vmatpush1.msra.mxu0 %v669
        %836 = vmatprep.subr.mxu0 %v672
        %837 = vmatpush1.msra.mxu0 %v671
        %838 = vmatprep.subr.mxu0 %v674
        %839 = vmatpush1.msra.mxu0 %v673
        %840 = vmatprep.subr.mxu0 %v676
        %841 = vmatpush1.msra.mxu0 %v675
        %842 = vmatprep.subr.mxu0 %v678
        %843 = vmatpush1.msra.mxu0 %v677
        %844 = vmatprep.subr.mxu0 %v680
        %845 = vmatpush1.msra.mxu0 %v679
        %846 = vmatprep.subr.mxu0 %v682
        %847 = vmatpush1.msra.mxu0 %v681
        %848 = vmatprep.subr.mxu0 %v684
        %849 = vmatpush1.msra.mxu0 %v683
        %850 = vmatprep.subr.mxu0 %v686
        %851 = vmatpush1.msra.mxu0 %v685
        %852 = vmatprep.subr.mxu0 %v688
        %853 = vmatpush1.msra.mxu0 %v687
        %854 = vmatprep.subr.mxu0 %v690
        %855 = vmatpush1.msra.mxu0 %v689
        %856 = vmatprep.subr.mxu0 %v692
        %857 = vmatpush1.msra.mxu0 %v691
        %858 = vmatprep.subr.mxu0 %v694
        %859 = vmatpush1.msra.mxu0 %v693
        %860 = vmatprep.subr.mxu0 %v696
        %861 = vmatpush1.msra.mxu0 %v695
        %862 = vmatprep.subr.mxu0 %v698
        %863 = vmatpush1.msra.mxu0 %v697
        %864 = vmatprep.subr.mxu0 %v700
        %865 = vmatpush1.msra.mxu0 %v699
        %866 = vmatprep.subr.mxu0 %v702
        %867 = vmatpush1.msra.mxu0 %v701
        %868 = vmatprep.mubr.f32.mxu0 %v562
        %869 = vmatmul.mubr.f32.gmra.mrb[0].mxu0 %v561
        %v870 = vpop.f32.mrb[0].mxu0
        %v871 = vadd.f32 %v782, %v870
        %v872 = vpop.f32.mrb[0].mxu0
        %v873 = vadd.f32 %v784, %v872
        %874 = vmatprep.mubr.f32.mxu0 %v566
        %875 = vmatmul.mubr.f32.gmra.mrb[0].mxu0 %v565
        %v876 = vpop.f32.mrb[0].mxu0
        %v877 = vadd.f32 %v788, %v876
        %v878 = vpop.f32.mrb[0].mxu0
        %v879 = vadd.f32 %v790, %v878
        %880 = vmatprep.mubr.f32.mxu0 %v570
        %881 = vmatmul.mubr.f32.gmra.mrb[0].mxu0 %v569
        %v882 = vpop.f32.mrb[0].mxu0
        %v883 = vadd.f32 %v794, %v882
        %v884 = vpop.f32.mrb[0].mxu0
        %v885 = vadd.f32 %v796, %v884
        %886 = vmatprep.mubr.f32.mxu0 %v574
        %887 = vmatmul.mubr.f32.gmra.mrb[0].mxu0 %v573
        %v888 = vpop.f32.mrb[0].mxu0
        %v889 = vadd.f32 %v800, %v888
        %v890 = vpop.f32.mrb[0].mxu0
        %v891 = vadd.f32 %v802, %v890
        %892 = vdwg.mxu0
        %v893 = vmax.f32 %v871, 0.0
        %v894 = vmax.f32 %v873, 0.0
        %v895 = vmax.f32 %v877, 0.0
        %v896 = vmax.f32 %v879, 0.0
        %v897 = vmax.f32 %v883, 0.0
        %v898 = vmax.f32 %v885, 0.0
        %v899 = vmax.f32 %v889, 0.0
        %v900 = vmax.f32 %v891, 0.0
        %v901 = vld [vmem:[#allocation6] sm:$0xff]
        %v902 = vld [vmem:[#allocation6 + $0x8] sm:$0xff]
        %v903 = vld [vmem:[#allocation6 + $0x10] sm:$0xff]
        %v904 = vld [vmem:[#allocation6 + $0x18] sm:$0xff]
        %v905 = vld [vmem:[#allocation6 + $0x20] sm:$0xff]
        %v906 = vld [vmem:[#allocation6 + $0x28] sm:$0xff]
        %v907 = vld [vmem:[#allocation6 + $0x30] sm:$0xff]
        %v908 = vld [vmem:[#allocation6 + $0x38] sm:$0xff]
        %v909 = vld [vmem:[#allocation6 + $0x40] sm:$0xff]
        %v910 = vld [vmem:[#allocation6 + $0x48] sm:$0xff]
        %v911 = vld [vmem:[#allocation6 + $0x50] sm:$0xff]
        %v912 = vld [vmem:[#allocation6 + $0x58] sm:$0xff]
        %v913 = vld [vmem:[#allocation6 + $0x60] sm:$0xff]
        %v914 = vld [vmem:[#allocation6 + $0x68] sm:$0xff]
        %v915 = vld [vmem:[#allocation6 + $0x70] sm:$0xff]
        %v916 = vld [vmem:[#allocation6 + $0x78] sm:$0xff]
        %v917 = vld [vmem:[#allocation6 + $0x80] sm:$0xff]
        %v918 = vld [vmem:[#allocation6 + $0x88] sm:$0xff]
        %v919 = vld [vmem:[#allocation6 + $0x90] sm:$0xff]
        %v920 = vld [vmem:[#allocation6 + $0x98] sm:$0xff]
        %v921 = vld [vmem:[#allocation6 + $0xa0] sm:$0xff]
        %v922 = vld [vmem:[#allocation6 + $0xa8] sm:$0xff]
        %v923 = vld [vmem:[#allocation6 + $0xb0] sm:$0xff]
        %v924 = vld [vmem:[#allocation6 + $0xb8] sm:$0xff]
        %v925 = vld [vmem:[#allocation6 + $0xc0] sm:$0xff]
        %v926 = vld [vmem:[#allocation6 + $0xc8] sm:$0xff]
        %v927 = vld [vmem:[#allocation6 + $0xd0] sm:$0xff]
        %v928 = vld [vmem:[#allocation6 + $0xd8] sm:$0xff]
        %v929 = vld [vmem:[#allocation6 + $0xe0] sm:$0xff]
        %v930 = vld [vmem:[#allocation6 + $0xe8] sm:$0xff]
        %v931 = vld [vmem:[#allocation6 + $0xf0] sm:$0xff]
        %v932 = vld [vmem:[#allocation6 + $0xf8] sm:$0xff]
        %v933 = vld [vmem:[%s6] sm:$0x1]
        %v935 = vlaneseq
        %v936 = vshrl.u32 %v935, 7
        %v937 = vsub.s32 0, %v936
        %v938 = vrot.slane %v933, %v937
        %940 = vmatprep.subr.mxu0 0.0
        %941 = vmatpush1.msra.mxu0 %v901
        %942 = vmatprep.subr.mxu0 0.0
        %943 = vmatpush1.msra.mxu0 %v902
        %944 = vmatprep.subr.mxu0 0.0
        %945 = vmatpush1.msra.mxu0 %v903
        %946 = vmatprep.subr.mxu0 0.0
        %947 = vmatpush1.msra.mxu0 %v904
        %948 = vmatprep.subr.mxu0 0.0
        %949 = vmatpush1.msra.mxu0 %v905
        %950 = vmatprep.subr.mxu0 0.0
        %951 = vmatpush1.msra.mxu0 %v906
        %952 = vmatprep.subr.mxu0 0.0
        %953 = vmatpush1.msra.mxu0 %v907
        %954 = vmatprep.subr.mxu0 0.0
        %955 = vmatpush1.msra.mxu0 %v908
        %956 = vmatprep.subr.mxu0 0.0
        %957 = vmatpush1.msra.mxu0 %v909
        %958 = vmatprep.subr.mxu0 0.0
        %959 = vmatpush1.msra.mxu0 %v910
        %960 = vmatprep.subr.mxu0 0.0
        %961 = vmatpush1.msra.mxu0 %v911
        %962 = vmatprep.subr.mxu0 0.0
        %963 = vmatpush1.msra.mxu0 %v912
        %964 = vmatprep.subr.mxu0 0.0
        %965 = vmatpush1.msra.mxu0 %v913
        %966 = vmatprep.subr.mxu0 0.0
        %967 = vmatpush1.msra.mxu0 %v914
        %968 = vmatprep.subr.mxu0 0.0
        %969 = vmatpush1.msra.mxu0 %v915
        %970 = vmatprep.subr.mxu0 0.0
        %971 = vmatpush1.msra.mxu0 %v916
        %972 = vmatprep.subr.mxu0 0.0
        %973 = vmatpush1.msra.mxu0 %v917
        %974 = vmatprep.subr.mxu0 0.0
        %975 = vmatpush1.msra.mxu0 %v918
        %976 = vmatprep.subr.mxu0 0.0
        %977 = vmatpush1.msra.mxu0 %v919
        %978 = vmatprep.subr.mxu0 0.0
        %979 = vmatpush1.msra.mxu0 %v920
        %980 = vmatprep.subr.mxu0 0.0
        %981 = vmatpush1.msra.mxu0 %v921
        %982 = vmatprep.subr.mxu0 0.0
        %983 = vmatpush1.msra.mxu0 %v922
        %984 = vmatprep.subr.mxu0 0.0
        %985 = vmatpush1.msra.mxu0 %v923
        %986 = vmatprep.subr.mxu0 0.0
        %987 = vmatpush1.msra.mxu0 %v924
        %988 = vmatprep.subr.mxu0 0.0
        %989 = vmatpush1.msra.mxu0 %v925
        %990 = vmatprep.subr.mxu0 0.0
        %991 = vmatpush1.msra.mxu0 %v926
        %992 = vmatprep.subr.mxu0 0.0
        %993 = vmatpush1.msra.mxu0 %v927
        %994 = vmatprep.subr.mxu0 0.0
        %995 = vmatpush1.msra.mxu0 %v928
        %996 = vmatprep.subr.mxu0 0.0
        %997 = vmatpush1.msra.mxu0 %v929
        %998 = vmatprep.subr.mxu0 0.0
        %999 = vmatpush1.msra.mxu0 %v930
        %1000 = vmatprep.subr.mxu0 0.0
        %1001 = vmatpush1.msra.mxu0 %v931
        %1002 = vmatprep.subr.mxu0 0.0
        %1003 = vmatpush1.msra.mxu0 %v932
        %1004 = vmatprep.mubr.f32.mxu0 %v894
        %1005 = vmatmul.mubr.f32.gmra.mrb[0].mxu0 %v893
        %v1006 = vpop.f32.mrb[0].mxu0
        %v1007 = vadd.f32 %v938, %v1006
        %v1008 = vpop.f32.mrb[0].mxu0
        %1009 = vmatprep.mubr.f32.mxu0 %v896
        %1010 = vmatmul.mubr.f32.gmra.mrb[0].mxu0 %v895
        %v1011 = vpop.f32.mrb[0].mxu0
        %v1012 = vadd.f32 %v938, %v1011
        %v1013 = vpop.f32.mrb[0].mxu0
        %1014 = vmatprep.mubr.f32.mxu0 %v898
        %1015 = vmatmul.mubr.f32.gmra.mrb[0].mxu0 %v897
        %v1016 = vpop.f32.mrb[0].mxu0
        %v1017 = vadd.f32 %v938, %v1016
        %v1018 = vpop.f32.mrb[0].mxu0
        %1019 = vmatprep.mubr.f32.mxu0 %v900
        %1020 = vmatmul.mubr.f32.gmra.mrb[0].mxu0 %v899
        %v1021 = vpop.f32.mrb[0].mxu0
        %v1022 = vadd.f32 %v938, %v1021
        %v1023 = vpop.f32.mrb[0].mxu0
        %1024 = vdwg.mxu0
        %1025 = vst [vmem:[%s324] sm:$0xff] %v1007
        %1026 = vst [vmem:[%s324 + $0x8] sm:$0xff] %v1012
        %1027 = vst [vmem:[%s324 + $0x10] sm:$0xff] %v1017
        %1028 = vst [vmem:[%s324 + $0x18] sm:$0xff] %v1022
        %s1029 = smul.u32 4, %s20
        %p1030 = scmp.lt.s32.totalorder %s1029, 7
        %s1031 = scalar_select %p1030, %s1029, 7
        %s1032 = smul.addr %s1031, 8
        %s1033 = scalar_lea.vmem %s7, %s1032
        // Predicated region
        $region61: #{pairnet_forward.1} parent=47 // pred_check
          %p1034 = pneg %p190
        $region62: #{pairnet_forward.1} parent=47 // pred_check_branch
          %1036 = sbr.rel (%p1034) target = $region64
        $region63: #{pairnet_forward.1} parent=47 // pred_region
          %s1037 = smul.u32 4, %s20
        $region64: #{pairnet_forward.1} parent=47 // pred_fallthru
          _
      $region48: #{pairnet_forward.1} parent=5 // pred_fallthru
        _
      %p1038 = scmp.le.s32.totalorder 2, %s15
      // Predicated region
      $region65: #{pairnet_forward.1} parent=5 // pred_check
        %p1039 = pneg %p1038
      $region66: #{pairnet_forward.1} parent=5 // pred_check_branch
        %1041 = sbr.rel (%p1039) target = $region68
      $region67: #{pairnet_forward.1} parent=5 // pred_region
        %s1042 = ssub.s32 %s15, 2
        // Predicated region
        $region69: #{pairnet_forward.1} parent=67 // pred_check
          %p1043 = pneg %p196
        $region70: #{pairnet_forward.1} parent=67 // pred_check_branch
          %1045 = sbr.rel (%p1043) target = $region72
        $region71: #{pairnet_forward.1} parent=67 // pred_region
          %s1046 = smul.u32 4, %s21
          %p1047 = scmp.lt.s32.totalorder %s1046, 7
          %s1048 = scalar_select %p1047, %s1046, 7
          %s1049 = smul.addr %s1048, 8
          %s1050 = scalar_lea.vmem %s7, %s1049
        $region72: #{pairnet_forward.1} parent=67 // pred_fallthru
          _
      $region68: #{pairnet_forward.1} parent=5 // pred_fallthru
        _
    $region6: #{pairnet_forward.1} parent=1 // loop_footer
      %s19 = sadd.s32 1, %s15
    $region7: #{pairnet_forward.1} parent=1 // loop_footer_branch
      %14 = sbr.rel target = $region3
    $region8: #{pairnet_forward.1} parent=1 // loop_exit
      _
    %1051 = vsyncpa [#allocation3], 1
    %s1052 = scalar_lea.sflag [#allocation3], 1
    %1053 = vsyncpa %s1052, 1
    %1054 = vsyncpa [#allocation5], 1

</llo_original>
